<compile_context>
chip_gen: v5e
topology: v5e:2x2
jax: 0.10.0
libtpu: 0.0.40
codegen_flags: <defaults>
</compile_context>

<pallas_src>
import jax
import jax.numpy as jnp
from jax.experimental import pallas as pl
from jax.experimental.pallas import tpu as pltpu

EPS = 0.1     # LayerNorm eps from the module
LANE = 128    # TPU lane width


def _round_up(x, m):
    return (x + m - 1) // m * m


def _default_batch_tile(B):
    if B <= 256:
        return B  # single step; overhead-dominated tiny batch
    # Prefer 512-2048 row tiles (mem-bound sweet spot) with an even number of
    # steps so v7x megacore can shard the grid across both TensorCores.
    for tile in (2048, 1024, 512, 256, 128, 64, 32, 16, 8):
        if tile < B and B % tile == 0 and (B // tile) % 2 == 0:
            return tile
    for tile in (2048, 1024, 512, 256, 128, 64, 32, 16, 8):
        if tile <= B and B % tile == 0:
            return tile
    return B


def _layernorm(x, gamma, beta, eps):
    # PyTorch nn.LayerNorm: biased variance over the last dim.
    mu = jnp.mean(x, axis=-1, keepdims=True)
    xc = x - mu
    var = jnp.mean(xc * xc, axis=-1, keepdims=True)
    return xc * jax.lax.rsqrt(var + eps) * gamma + beta


def dual_encoder_kernel(real_ref, recon_ref, w1_ref, w2_ref, vec_ref, out_ref):
    # Consolidated [8, H] parameter block (static row slices, zero-cost views).
    b1 = vec_ref[0:1, :]
    g1 = vec_ref[1:2, :]
    be1 = vec_ref[2:3, :]
    b2 = vec_ref[3:4, :]
    g2 = vec_ref[4:5, :]
    be2 = vec_ref[5:6, :]

    w1 = w1_ref[...]
    w2 = w2_ref[...]

    def encode(x):
        h1 = jnp.dot(x, w1, preferred_element_type=jnp.float32) + b1
        h1 = _layernorm(h1, g1, be1, EPS)
        h = jnp.dot(h1, w2, preferred_element_type=jnp.float32) + b2 + h1
        return _layernorm(h, g2, be2, EPS)

    real = real_ref[...]      # [TB, D] f32 (unpadded)
    recon = recon_ref[...]    # [TB, D] f32

    # norm = real.pow(2).sum(-1).sqrt(); real = real / norm[:, None]
    # -> real * rsqrt(sum(real^2)); rsqrt runs on the EUP slot.
    sumsq = jnp.sum(real * real, axis=-1, keepdims=True)
    real_n = real * jax.lax.rsqrt(sumsq)

    h2 = encode(real_n)       # real branch  [TB, H]
    h5 = encode(recon)        # recon branch [TB, H]

    tb, d = real.shape
    hdim = h2.shape[-1]

    # Packed, lane-dense output block: [h2 | h5 | real_n | 0...]
    out_ref[:, 0:hdim] = h2
    out_ref[:, hdim:2 * hdim] = h5
    out_ref[:, 2 * hdim:2 * hdim + d] = real_n
    tail = out_ref.shape[-1] - (2 * hdim + d)
    if tail > 0:
        out_ref[:, 2 * hdim + d:] = jnp.zeros((tb, tail), jnp.float32)


def dual_encoder_forward(real, recon, params, *, batch_tile=None):
    """params: w1 [D_in,H] (pre-transposed), b1/g1/be1/b2/g2/be2 [1,H], w2 [H,H]."""
    B, D_in = real.shape
    H = params["w1"].shape[1]

    TB = batch_tile if batch_tile is not None else _default_batch_tile(B)
    assert B % TB == 0, "batch must be divisible by batch_tile"
    assert TB % 8 == 0 or TB == B, "batch tile must be sublane-aligned"

    f32 = jnp.float32
    # Packed output width: h2 (H) | h5 (H) | real_n (D_in) | zero tail.
    OUT_W = max(LANE, _round_up(2 * H + D_in, LANE))

    # Consolidate the six [1,H] vectors into one sublane-aligned [8,H] array.
    vecs = jnp.concatenate(
        [params["b1"], params["g1"], params["be1"],
         params["b2"], params["g2"], params["be2"],
         jnp.zeros((2, H), f32)], axis=0).astype(f32)

    grid = (B // TB,)

    packed = pl.pallas_call(
        dual_encoder_kernel,
        out_shape=jax.ShapeDtypeStruct((B, OUT_W), f32),
        grid_spec=pltpu.PrefetchScalarGridSpec(
            num_scalar_prefetch=0,
            grid=grid,
            in_specs=[
                pl.BlockSpec((TB, D_in), lambda i: (i, 0)),   # real (unpadded)
                pl.BlockSpec((TB, D_in), lambda i: (i, 0)),   # recon (unpadded)
                pl.BlockSpec((D_in, H), lambda i: (0, 0)),    # w1
                pl.BlockSpec((H, H), lambda i: (0, 0)),       # w2
                pl.BlockSpec((8, H), lambda i: (0, 0)),       # packed vectors
            ],
            out_specs=pl.BlockSpec((TB, OUT_W), lambda i: (i, 0)),
        ),
        compiler_params=pltpu.CompilerParams(
            dimension_semantics=("parallel",)),
    )(real.astype(f32), recon.astype(f32),
      params["w1"].astype(f32), params["w2"].astype(f32), vecs)

    h2 = packed[:, :H]
    h5 = packed[:, H:2 * H]
    h3 = packed[:, 2 * H:2 * H + D_in]   # real_n
    h6 = recon                            # pure passthrough, never DMA'd
    return h2, h3, h5, h6


# ---------------- pure-JAX reference (for correctness check) ----------------
def dual_encoder_ref(real, recon, params):
    def ln(x, g, b):
        mu = jnp.mean(x, -1, keepdims=True)
        var = jnp.mean((x - mu) ** 2, -1, keepdims=True)
        return (x - mu) / jnp.sqrt(var + EPS) * g + b

    def branch(x):
        h1 = ln(x @ params["w1"] + params["b1"], params["g1"], params["be1"])
        return ln(h1 @ params["w2"] + params["b2"] + h1,
                  params["g2"], params["be2"])

    norm = jnp.sqrt(jnp.sum(real ** 2, axis=-1, keepdims=True))
    real_n = real / norm
    return branch(real_n), real_n, branch(recon), recon


if __name__ == "__main__":
    # Small shapes consistent with the module: batch=16, input_dim=48, hidden=32
    B, D_IN, HID = 16, 48, 32

    key = jax.random.PRNGKey(0)
    k_real, k_recon, k_w1, k_b1, k_w2, k_b2 = jax.random.split(key, 6)

    real = jax.random.normal(k_real, (B, D_IN), dtype=jnp.float32)
    recon = jax.random.normal(k_recon, (B, D_IN), dtype=jnp.float32)

    # PyTorch-like init (uniform fan-in for Linear, ones/zeros for LayerNorm).
    # Linear weights stored pre-transposed [in, out].
    bound1 = 1.0 / jnp.sqrt(D_IN)
    bound2 = 1.0 / jnp.sqrt(HID)
    params = {
        "w1": jax.random.uniform(k_w1, (D_IN, HID), jnp.float32, -bound1, bound1),
        "b1": jax.random.uniform(k_b1, (1, HID), jnp.float32, -bound1, bound1),
        "w2": jax.random.uniform(k_w2, (HID, HID), jnp.float32, -bound2, bound2),
        "b2": jax.random.uniform(k_b2, (1, HID), jnp.float32, -bound2, bound2),
        "g1": jnp.ones((1, HID), jnp.float32),
        "be1": jnp.zeros((1, HID), jnp.float32),
        "g2": jnp.ones((1, HID), jnp.float32),
        "be2": jnp.zeros((1, HID), jnp.float32),
    }

    outs = dual_encoder_forward(real, recon, params)
    outs = jax.block_until_ready(outs)

    refs = dual_encoder_ref(real, recon, params)
    for o, r in zip(outs, refs):
        assert o.shape == r.shape, (o.shape, r.shape)
        assert jnp.max(jnp.abs(o - r)) < 1e-4, jnp.max(jnp.abs(o - r))

    print("KERNEL_OK")
</pallas_src>

<mosaic_0001>
module attributes {stable_mosaic.version = 11 : i64} {
  func.func @dual_encoder_kernel(%arg0: i32, %arg1: memref<16x48xf32, #tpu.memory_space<vmem>>, %arg2: memref<16x48xf32, #tpu.memory_space<vmem>>, %arg3: memref<48x32xf32, #tpu.memory_space<vmem>>, %arg4: memref<32x32xf32, #tpu.memory_space<vmem>>, %arg5: memref<8x32xf32, #tpu.memory_space<vmem>>, %arg6: memref<16x128xf32, #tpu.memory_space<vmem>>) attributes {dimension_semantics = [#tpu.dimension_semantics<parallel>], iteration_bounds = array<i64: 1>, scalar_prefetch = 0 : i64, scratch_operands = 0 : i64, tpu.core_type = #tpu.core_type<tc>, window_params = [{transform_indices = @transform_0, window_bounds = array<i64: 16, 48>}, {transform_indices = @transform_1, window_bounds = array<i64: 16, 48>}, {pipeline_mode = #tpu.pipeline_mode<synchronous>, transform_indices = @transform_2, window_bounds = array<i64: 48, 32>}, {pipeline_mode = #tpu.pipeline_mode<synchronous>, transform_indices = @transform_3, window_bounds = array<i64: 32, 32>}, {pipeline_mode = #tpu.pipeline_mode<synchronous>, transform_indices = @transform_4, window_bounds = array<i64: 8, 32>}, {transform_indices = @transform_5, window_bounds = array<i64: 16, 128>}]} {
    %c0 = arith.constant 0 : index
    %c0_0 = arith.constant 0 : index
    %0 = vector.load %arg5[%c0, %c0_0] : memref<8x32xf32, #tpu.memory_space<vmem>>, vector<1x32xf32>
    %c1 = arith.constant 1 : index
    %c0_1 = arith.constant 0 : index
    %1 = vector.load %arg5[%c1, %c0_1] : memref<8x32xf32, #tpu.memory_space<vmem>>, vector<1x32xf32>
    %c2 = arith.constant 2 : index
    %c0_2 = arith.constant 0 : index
    %2 = vector.load %arg5[%c2, %c0_2] : memref<8x32xf32, #tpu.memory_space<vmem>>, vector<1x32xf32>
    %c3 = arith.constant 3 : index
    %c0_3 = arith.constant 0 : index
    %3 = vector.load %arg5[%c3, %c0_3] : memref<8x32xf32, #tpu.memory_space<vmem>>, vector<1x32xf32>
    %c4 = arith.constant 4 : index
    %c0_4 = arith.constant 0 : index
    %4 = vector.load %arg5[%c4, %c0_4] : memref<8x32xf32, #tpu.memory_space<vmem>>, vector<1x32xf32>
    %c5 = arith.constant 5 : index
    %c0_5 = arith.constant 0 : index
    %5 = vector.load %arg5[%c5, %c0_5] : memref<8x32xf32, #tpu.memory_space<vmem>>, vector<1x32xf32>
    %c0_6 = arith.constant 0 : index
    %c0_7 = arith.constant 0 : index
    %6 = vector.load %arg3[%c0_6, %c0_7] : memref<48x32xf32, #tpu.memory_space<vmem>>, vector<48x32xf32>
    %c0_8 = arith.constant 0 : index
    %c0_9 = arith.constant 0 : index
    %7 = vector.load %arg4[%c0_8, %c0_9] : memref<32x32xf32, #tpu.memory_space<vmem>>, vector<32x32xf32>
    %c0_10 = arith.constant 0 : index
    %c0_11 = arith.constant 0 : index
    %8 = vector.load %arg1[%c0_10, %c0_11] : memref<16x48xf32, #tpu.memory_space<vmem>>, vector<16x48xf32>
    %c0_12 = arith.constant 0 : index
    %c0_13 = arith.constant 0 : index
    %9 = vector.load %arg2[%c0_12, %c0_13] : memref<16x48xf32, #tpu.memory_space<vmem>>, vector<16x48xf32>
    %10 = arith.mulf %8, %8 : vector<16x48xf32>
    %cst = arith.constant dense<0.000000e+00> : vector<16xf32>
    %11 = vector.multi_reduction <add>, %10, %cst [1] : vector<16x48xf32> to vector<16xf32>
    %12 = vector.shape_cast %11 : vector<16xf32> to vector<16x1xf32>
    %13 = math.rsqrt %12 : vector<16x1xf32>
    %14 = vector.broadcast %13 : vector<16x1xf32> to vector<16x48xf32>
    %15 = arith.mulf %8, %14 : vector<16x48xf32>
    %cst_14 = arith.constant dense<0.000000e+00> : vector<16x32xf32>
    %16 = tpu.matmul %15, %6, %cst_14 {dimension_numbers = #tpu.dot_dimension_numbers<[1], [0], [0], [1], [0, 0, 1, 1], [], []>} : vector<16x48xf32>, vector<48x32xf32>, vector<16x32xf32> -> vector<16x32xf32>
    %17 = vector.broadcast %0 : vector<1x32xf32> to vector<16x32xf32>
    %18 = arith.addf %16, %17 : vector<16x32xf32>
    %cst_15 = arith.constant dense<0.000000e+00> : vector<16xf32>
    %19 = vector.multi_reduction <add>, %18, %cst_15 [1] : vector<16x32xf32> to vector<16xf32>
    %20 = vector.shape_cast %19 : vector<16xf32> to vector<16x1xf32>
    %cst_16 = arith.constant 3.200000e+01 : f32
    %21 = vector.broadcast %cst_16 : f32 to vector<16x1xf32>
    %22 = arith.divf %20, %21 : vector<16x1xf32>
    %23 = vector.broadcast %22 : vector<16x1xf32> to vector<16x32xf32>
    %24 = arith.subf %18, %23 : vector<16x32xf32>
    %25 = arith.mulf %24, %24 : vector<16x32xf32>
    %cst_17 = arith.constant dense<0.000000e+00> : vector<16xf32>
    %26 = vector.multi_reduction <add>, %25, %cst_17 [1] : vector<16x32xf32> to vector<16xf32>
    %27 = vector.shape_cast %26 : vector<16xf32> to vector<16x1xf32>
    %cst_18 = arith.constant 3.200000e+01 : f32
    %28 = vector.broadcast %cst_18 : f32 to vector<16x1xf32>
    %29 = arith.divf %27, %28 : vector<16x1xf32>
    %cst_19 = arith.constant 1.000000e-01 : f32
    %30 = vector.broadcast %cst_19 : f32 to vector<16x1xf32>
    %31 = arith.addf %29, %30 : vector<16x1xf32>
    %32 = math.rsqrt %31 : vector<16x1xf32>
    %33 = vector.broadcast %32 : vector<16x1xf32> to vector<16x32xf32>
    %34 = arith.mulf %24, %33 : vector<16x32xf32>
    %35 = vector.broadcast %1 : vector<1x32xf32> to vector<16x32xf32>
    %36 = arith.mulf %34, %35 : vector<16x32xf32>
    %37 = vector.broadcast %2 : vector<1x32xf32> to vector<16x32xf32>
    %38 = arith.addf %36, %37 : vector<16x32xf32>
    %cst_20 = arith.constant dense<0.000000e+00> : vector<16x32xf32>
    %39 = tpu.matmul %38, %7, %cst_20 {dimension_numbers = #tpu.dot_dimension_numbers<[1], [0], [0], [1], [0, 0, 1, 1], [], []>} : vector<16x32xf32>, vector<32x32xf32>, vector<16x32xf32> -> vector<16x32xf32>
    %40 = vector.broadcast %3 : vector<1x32xf32> to vector<16x32xf32>
    %41 = arith.addf %39, %40 : vector<16x32xf32>
    %42 = arith.addf %41, %38 : vector<16x32xf32>
    %cst_21 = arith.constant dense<0.000000e+00> : vector<16xf32>
    %43 = vector.multi_reduction <add>, %42, %cst_21 [1] : vector<16x32xf32> to vector<16xf32>
    %44 = vector.shape_cast %43 : vector<16xf32> to vector<16x1xf32>
    %cst_22 = arith.constant 3.200000e+01 : f32
    %45 = vector.broadcast %cst_22 : f32 to vector<16x1xf32>
    %46 = arith.divf %44, %45 : vector<16x1xf32>
    %47 = vector.broadcast %46 : vector<16x1xf32> to vector<16x32xf32>
    %48 = arith.subf %42, %47 : vector<16x32xf32>
    %49 = arith.mulf %48, %48 : vector<16x32xf32>
    %cst_23 = arith.constant dense<0.000000e+00> : vector<16xf32>
    %50 = vector.multi_reduction <add>, %49, %cst_23 [1] : vector<16x32xf32> to vector<16xf32>
    %51 = vector.shape_cast %50 : vector<16xf32> to vector<16x1xf32>
    %cst_24 = arith.constant 3.200000e+01 : f32
    %52 = vector.broadcast %cst_24 : f32 to vector<16x1xf32>
    %53 = arith.divf %51, %52 : vector<16x1xf32>
    %cst_25 = arith.constant 1.000000e-01 : f32
    %54 = vector.broadcast %cst_25 : f32 to vector<16x1xf32>
    %55 = arith.addf %53, %54 : vector<16x1xf32>
    %56 = math.rsqrt %55 : vector<16x1xf32>
    %57 = vector.broadcast %56 : vector<16x1xf32> to vector<16x32xf32>
    %58 = arith.mulf %48, %57 : vector<16x32xf32>
    %59 = vector.broadcast %4 : vector<1x32xf32> to vector<16x32xf32>
    %60 = arith.mulf %58, %59 : vector<16x32xf32>
    %61 = vector.broadcast %5 : vector<1x32xf32> to vector<16x32xf32>
    %62 = arith.addf %60, %61 : vector<16x32xf32>
    %cst_26 = arith.constant dense<0.000000e+00> : vector<16x32xf32>
    %63 = tpu.matmul %9, %6, %cst_26 {dimension_numbers = #tpu.dot_dimension_numbers<[1], [0], [0], [1], [0, 0, 1, 1], [], []>} : vector<16x48xf32>, vector<48x32xf32>, vector<16x32xf32> -> vector<16x32xf32>
    %64 = vector.broadcast %0 : vector<1x32xf32> to vector<16x32xf32>
    %65 = arith.addf %63, %64 : vector<16x32xf32>
    %cst_27 = arith.constant dense<0.000000e+00> : vector<16xf32>
    %66 = vector.multi_reduction <add>, %65, %cst_27 [1] : vector<16x32xf32> to vector<16xf32>
    %67 = vector.shape_cast %66 : vector<16xf32> to vector<16x1xf32>
    %cst_28 = arith.constant 3.200000e+01 : f32
    %68 = vector.broadcast %cst_28 : f32 to vector<16x1xf32>
    %69 = arith.divf %67, %68 : vector<16x1xf32>
    %70 = vector.broadcast %69 : vector<16x1xf32> to vector<16x32xf32>
    %71 = arith.subf %65, %70 : vector<16x32xf32>
    %72 = arith.mulf %71, %71 : vector<16x32xf32>
    %cst_29 = arith.constant dense<0.000000e+00> : vector<16xf32>
    %73 = vector.multi_reduction <add>, %72, %cst_29 [1] : vector<16x32xf32> to vector<16xf32>
    %74 = vector.shape_cast %73 : vector<16xf32> to vector<16x1xf32>
    %cst_30 = arith.constant 3.200000e+01 : f32
    %75 = vector.broadcast %cst_30 : f32 to vector<16x1xf32>
    %76 = arith.divf %74, %75 : vector<16x1xf32>
    %cst_31 = arith.constant 1.000000e-01 : f32
    %77 = vector.broadcast %cst_31 : f32 to vector<16x1xf32>
    %78 = arith.addf %76, %77 : vector<16x1xf32>
    %79 = math.rsqrt %78 : vector<16x1xf32>
    %80 = vector.broadcast %79 : vector<16x1xf32> to vector<16x32xf32>
    %81 = arith.mulf %71, %80 : vector<16x32xf32>
    %82 = vector.broadcast %1 : vector<1x32xf32> to vector<16x32xf32>
    %83 = arith.mulf %81, %82 : vector<16x32xf32>
    %84 = vector.broadcast %2 : vector<1x32xf32> to vector<16x32xf32>
    %85 = arith.addf %83, %84 : vector<16x32xf32>
    %cst_32 = arith.constant dense<0.000000e+00> : vector<16x32xf32>
    %86 = tpu.matmul %85, %7, %cst_32 {dimension_numbers = #tpu.dot_dimension_numbers<[1], [0], [0], [1], [0, 0, 1, 1], [], []>} : vector<16x32xf32>, vector<32x32xf32>, vector<16x32xf32> -> vector<16x32xf32>
    %87 = vector.broadcast %3 : vector<1x32xf32> to vector<16x32xf32>
    %88 = arith.addf %86, %87 : vector<16x32xf32>
    %89 = arith.addf %88, %85 : vector<16x32xf32>
    %cst_33 = arith.constant dense<0.000000e+00> : vector<16xf32>
    %90 = vector.multi_reduction <add>, %89, %cst_33 [1] : vector<16x32xf32> to vector<16xf32>
    %91 = vector.shape_cast %90 : vector<16xf32> to vector<16x1xf32>
    %cst_34 = arith.constant 3.200000e+01 : f32
    %92 = vector.broadcast %cst_34 : f32 to vector<16x1xf32>
    %93 = arith.divf %91, %92 : vector<16x1xf32>
    %94 = vector.broadcast %93 : vector<16x1xf32> to vector<16x32xf32>
    %95 = arith.subf %89, %94 : vector<16x32xf32>
    %96 = arith.mulf %95, %95 : vector<16x32xf32>
    %cst_35 = arith.constant dense<0.000000e+00> : vector<16xf32>
    %97 = vector.multi_reduction <add>, %96, %cst_35 [1] : vector<16x32xf32> to vector<16xf32>
    %98 = vector.shape_cast %97 : vector<16xf32> to vector<16x1xf32>
    %cst_36 = arith.constant 3.200000e+01 : f32
    %99 = vector.broadcast %cst_36 : f32 to vector<16x1xf32>
    %100 = arith.divf %98, %99 : vector<16x1xf32>
    %cst_37 = arith.constant 1.000000e-01 : f32
    %101 = vector.broadcast %cst_37 : f32 to vector<16x1xf32>
    %102 = arith.addf %100, %101 : vector<16x1xf32>
    %103 = math.rsqrt %102 : vector<16x1xf32>
    %104 = vector.broadcast %103 : vector<16x1xf32> to vector<16x32xf32>
    %105 = arith.mulf %95, %104 : vector<16x32xf32>
    %106 = vector.broadcast %4 : vector<1x32xf32> to vector<16x32xf32>
    %107 = arith.mulf %105, %106 : vector<16x32xf32>
    %108 = vector.broadcast %5 : vector<1x32xf32> to vector<16x32xf32>
    %109 = arith.addf %107, %108 : vector<16x32xf32>
    %c0_38 = arith.constant 0 : index
    %c0_39 = arith.constant 0 : index
    %110 = vector.load %arg6[%c0_38, %c0_39] : memref<16x128xf32, #tpu.memory_space<vmem>>, vector<16x32xf32>
    tpu.vector_store %arg6[%c0_38, %c0_39], %62 {strides = array<i32>} : memref<16x128xf32, #tpu.memory_space<vmem>>, vector<16x32xf32>,
    %c0_40 = arith.constant 0 : index
    %c32 = arith.constant 32 : index
    %111 = vector.load %arg6[%c0_40, %c32] : memref<16x128xf32, #tpu.memory_space<vmem>>, vector<16x32xf32>
    tpu.vector_store %arg6[%c0_40, %c32], %109 {strides = array<i32>} : memref<16x128xf32, #tpu.memory_space<vmem>>, vector<16x32xf32>,
    %c0_41 = arith.constant 0 : index
    %c64 = arith.constant 64 : index
    %112 = vector.load %arg6[%c0_41, %c64] : memref<16x128xf32, #tpu.memory_space<vmem>>, vector<16x48xf32>
    tpu.vector_store %arg6[%c0_41, %c64], %15 {strides = array<i32>} : memref<16x128xf32, #tpu.memory_space<vmem>>, vector<16x48xf32>,
    %cst_42 = arith.constant 0.000000e+00 : f32
    %113 = vector.broadcast %cst_42 : f32 to vector<16x16xf32>
    %c0_43 = arith.constant 0 : index
    %c112 = arith.constant 112 : index
    %114 = vector.load %arg6[%c0_43, %c112] : memref<16x128xf32, #tpu.memory_space<vmem>>, vector<16x16xf32>
    tpu.vector_store %arg6[%c0_43, %c112], %113 {strides = array<i32>} : memref<16x128xf32, #tpu.memory_space<vmem>>, vector<16x16xf32>,
    return
  }
  func.func @transform_0(%arg0: i32) -> (i32, i32) {
    %c0_i32 = arith.constant 0 : i32
    %c0_i32_0 = arith.constant 0 : i32
    return %arg0, %c0_i32 : i32, i32
  }
  func.func @transform_1(%arg0: i32) -> (i32, i32) {
    %c0_i32 = arith.constant 0 : i32
    %c0_i32_0 = arith.constant 0 : i32
    return %arg0, %c0_i32 : i32, i32
  }
  func.func @transform_2(%arg0: i32) -> (i32, i32) {
    %c0_i32 = arith.constant 0 : i32
    %c0_i32_0 = arith.constant 0 : i32
    %c0_i32_1 = arith.constant 0 : i32
    return %c0_i32, %c0_i32_0 : i32, i32
  }
  func.func @transform_3(%arg0: i32) -> (i32, i32) {
    %c0_i32 = arith.constant 0 : i32
    %c0_i32_0 = arith.constant 0 : i32
    %c0_i32_1 = arith.constant 0 : i32
    return %c0_i32, %c0_i32_0 : i32, i32
  }
  func.func @transform_4(%arg0: i32) -> (i32, i32) {
    %c0_i32 = arith.constant 0 : i32
    %c0_i32_0 = arith.constant 0 : i32
    %c0_i32_1 = arith.constant 0 : i32
    return %c0_i32, %c0_i32_0 : i32, i32
  }
  func.func @transform_5(%arg0: i32) -> (i32, i32) {
    %c0_i32 = arith.constant 0 : i32
    %c0_i32_0 = arith.constant 0 : i32
    return %arg0, %c0_i32 : i32, i32
  }
}

</mosaic_0001>

<llo_original>
// kernel: tpu_custom_call.1
$region0: #{tpu_custom_call.1}
  #allocation0 [shape = 'u32[]', space=smem, size = 0x4, offset = 0x4, fixed_abs, tag = 'smem constant byte address 0x4 - core index']
  #allocation1 [shape = 'u32[72,128]{1,0:T(1,128)}', space=vmem, size = 0x9000, scoped, tag = 'internal scratch']
  %s0 = inlined_call_operand.vmem [shape: f32[16,48], index: 0, kind: input, shape index: {}]
  %s1 = inlined_call_operand.vmem [shape: f32[16,48], index: 1, kind: input, shape index: {}]
  %s2 = inlined_call_operand.vmem [shape: f32[48,32], index: 2, kind: input, shape index: {}]
  %s3 = inlined_call_operand.vmem [shape: f32[32,32], index: 3, kind: input, shape index: {}]
  %s4 = inlined_call_operand.vmem [shape: f32[8,32], index: 4, kind: input, shape index: {}]
  %s5 = inlined_call_operand.hbm [shape: f32[16,128], index: 5, kind: output, shape index: {}]
  %s6 = sld [smem:[#allocation0]]
  $region30: #{tpu_custom_call.1} parent=0
    _
  %s8 = ssub.s32 1, %s6
  %s9 = scalar_select 0, %s8, %s6
  $region1: #{tpu_custom_call.1} parent=0
    #allocation2 [shape = 'u8[8192]{0}', space=vmem, size = 0x2000, scoped, tag = 'output window, operand 0, single buffered']
    #allocation3 [shape = 's32[1]{0}', space=sflag, size = 0x4, scoped, tag = 'scoped memory for tpu_custom_call.1']
    %10 = vsyncpa [#allocation3], 0
    // Predicated region
    $region2: #{tpu_custom_call.1} parent=1 // pred_check
      _
    $region3: #{tpu_custom_call.1} parent=1 // pred_check_branch
      %12 = sbr.rel (0) target = $region5
    $region4: #{tpu_custom_call.1} parent=1 // pred_region
      _
    $region5: #{tpu_custom_call.1} parent=1 // pred_fallthru
      _
    // Predicated region
    $region6: #{tpu_custom_call.1} parent=1 // pred_check
      _
    $region7: #{tpu_custom_call.1} parent=1 // pred_check_branch
      %14 = sbr.rel (0) target = $region9
    $region8: #{tpu_custom_call.1} parent=1 // pred_region
      _
    $region9: #{tpu_custom_call.1} parent=1 // pred_fallthru
      _
    // Predicated region
    $region10: #{tpu_custom_call.1} parent=1 // pred_check
      _
    $region11: #{tpu_custom_call.1} parent=1 // pred_check_branch
      %16 = sbr.rel (0) target = $region13
    $region12: #{tpu_custom_call.1} parent=1 // pred_region
      _
    $region13: #{tpu_custom_call.1} parent=1 // pred_fallthru
      _
    // Predicated region
    $region14: #{tpu_custom_call.1} parent=1 // pred_check
      _
    $region15: #{tpu_custom_call.1} parent=1 // pred_check_branch
      %18 = sbr.rel (0) target = $region17
    $region16: #{tpu_custom_call.1} parent=1 // pred_region
      _
    $region17: #{tpu_custom_call.1} parent=1 // pred_fallthru
      _
    // Predicated region
    $region18: #{tpu_custom_call.1} parent=1 // pred_check
      _
    $region19: #{tpu_custom_call.1} parent=1 // pred_check_branch
      %20 = sbr.rel (0) target = $region21
    $region20: #{tpu_custom_call.1} parent=1 // pred_region
      _
    $region21: #{tpu_custom_call.1} parent=1 // pred_fallthru
      _
    %v21 = vld [vmem:[%s4] sm:$0x1]
    %v22 = vld [vmem:[%s4 + $0x1] sm:$0x1]
    %v23 = vld [vmem:[%s4 + $0x2] sm:$0x1]
    %v24 = vld [vmem:[%s4 + $0x3] sm:$0x1]
    %v25 = vld [vmem:[%s4 + $0x4] sm:$0x1]
    %v26 = vld [vmem:[%s4 + $0x5] sm:$0x1]
    %v27 = vld [vmem:[%s2] sm:$0xff]
    %v28 = vld [vmem:[%s2 + $0x8] sm:$0xff]
    %v29 = vld [vmem:[%s2 + $0x10] sm:$0xff]
    %v30 = vld [vmem:[%s2 + $0x18] sm:$0xff]
    %v31 = vld [vmem:[%s2 + $0x20] sm:$0xff]
    %v32 = vld [vmem:[%s2 + $0x28] sm:$0xff]
    %v33 = vld [vmem:[%s3] sm:$0xff]
    %v34 = vld [vmem:[%s3 + $0x8] sm:$0xff]
    %v35 = vld [vmem:[%s3 + $0x10] sm:$0xff]
    %v36 = vld [vmem:[%s3 + $0x18] sm:$0xff]
    %v37 = vld [vmem:[%s0] sm:$0xff]
    %v38 = vld [vmem:[%s0 + $0x8] sm:$0xff]
    %v39 = vld [vmem:[%s1] sm:$0xff]
    %v40 = vld [vmem:[%s1 + $0x8] sm:$0xff]
    %v41 = vmul.f32 %v37, %v37
    %v42 = vmul.f32 %v38, %v38
    %vm43 = vcmask 392192
    %v44 = vsel %vm43, %v41, 0.0
    %45 = vadd.xlane.f32.xlu0 %v44
    %v46 = vpop.xlane.xlu0 %45
    %v47 = vsel %vm43, %v42, 0.0
    %48 = vadd.xlane.f32.xlu0 %v47
    %v49 = vpop.xlane.xlu0 %48
    %v50 = vrsqrt.pop %v46
    %v51 = vmul.f32 %v50, %v46
    %v52 = vmul.f32 %v51, %v50
    %v53 = vmul.f32 0.5, %v52
    %v54 = vsub.f32 1.5, %v53
    %v55 = vmul.f32 %v50, %v54
    %vm56 = vweird.f32 %v46
    %vm57 = vweird.f32 %v50
    %vm58 = vmor %vm56, %vm57
    %v59 = vsel %vm58, %v50, %v55
    %v60 = vrsqrt.pop %v49
    %v61 = vmul.f32 %v60, %v49
    %v62 = vmul.f32 %v61, %v60
    %v63 = vmul.f32 0.5, %v62
    %v64 = vsub.f32 1.5, %v63
    %v65 = vmul.f32 %v60, %v64
    %vm66 = vweird.f32 %v49
    %vm67 = vweird.f32 %v60
    %vm68 = vmor %vm66, %vm67
    %v69 = vsel %vm68, %v60, %v65
    %v70 = vmul.f32 %v37, %v59
    %v71 = vmul.f32 %v38, %v69
    %v72 = vperm.slane %v21, 0
    %v74 = vsel %vm43, %v70, 0
    %v77 = vsel %vm43, %v71, 0
    %79 = vmatpush.msra.mxu0 0.0
    %80 = vmatpush.msra.mxu0 0.0
    %81 = vmatpush.msra.mxu0 0.0
    %82 = vmatpush.msra.mxu0 0.0
    %83 = vmatpush.msra.mxu0 0.0
    %84 = vmatpush.msra.mxu0 0.0
    %85 = vmatpush.msra.mxu0 0.0
    %86 = vmatpush.msra.mxu0 0.0
    %87 = vmatpush.msra.mxu0 0.0
    %88 = vmatpush.msra.mxu0 0.0
    %89 = vmatpush.msra.mxu0 %v32
    %90 = vmatpush.msra.mxu0 %v31
    %91 = vmatpush.msra.mxu0 %v30
    %92 = vmatpush.msra.mxu0 %v29
    %93 = vmatpush.msra.mxu0 %v28
    %94 = vmatpush.msra.mxu0 %v27
    %95 = vmatmul.f32.gmra.mxu0 %v74
    %v96 = vpop.f32.mrf.mxu0
    %v97 = vadd.f32 %v72, %v96
    %98 = vmatmul.f32.gmra.mxu0 %v77
    %v99 = vpop.f32.mrf.mxu0
    %v100 = vadd.f32 %v72, %v99
    %101 = vdwg.mxu0
    %vm102 = vcmask 261120
    %v103 = vsel %vm102, %v97, 0.0
    %104 = vadd.xlane.f32.xlu0 %v103
    %v105 = vpop.xlane.xlu0 %104
    %v106 = vsel %vm102, %v100, 0.0
    %107 = vadd.xlane.f32.xlu0 %v106
    %v108 = vpop.xlane.xlu0 %107
    %v109 = vrcp.pop 32.0
    %v110 = vmul.f32 32.0, %v109
    %v111 = vsub.f32 1.0, %v110
    %v112 = vmul.f32 %v109, %v111
    %v113 = vadd.f32 %v109, %v112
    %vm114 = vweird.f32 %v109
    %v115 = vsel %vm114, %v109, %v113
    %v116 = vmul.f32 %v105, %v115
    %v117 = vmul.f32 %v108, %v115
    %v118 = vsub.f32 %v97, %v116
    %v119 = vsub.f32 %v100, %v117
    %v120 = vmul.f32 %v118, %v118
    %v121 = vmul.f32 %v119, %v119
    %v122 = vsel %vm102, %v120, 0.0
    %123 = vadd.xlane.f32.xlu0 %v122
    %v124 = vpop.xlane.xlu0 %123
    %v125 = vsel %vm102, %v121, 0.0
    %126 = vadd.xlane.f32.xlu0 %v125
    %v127 = vpop.xlane.xlu0 %126
    %v128 = vmul.f32 %v124, %v115
    %v129 = vmul.f32 %v127, %v115
    %v130 = vadd.f32 %v128, 0.1
    %v131 = vadd.f32 %v129, 0.1
    %v132 = vrsqrt.pop %v130
    %v133 = vmul.f32 %v132, %v130
    %v134 = vmul.f32 %v133, %v132
    %v135 = vmul.f32 0.5, %v134
    %v136 = vsub.f32 1.5, %v135
    %v137 = vmul.f32 %v132, %v136
    %vm138 = vweird.f32 %v130
    %vm139 = vweird.f32 %v132
    %vm140 = vmor %vm138, %vm139
    %v141 = vsel %vm140, %v132, %v137
    %v142 = vrsqrt.pop %v131
    %v143 = vmul.f32 %v142, %v131
    %v144 = vmul.f32 %v143, %v142
    %v145 = vmul.f32 0.5, %v144
    %v146 = vsub.f32 1.5, %v145
    %v147 = vmul.f32 %v142, %v146
    %vm148 = vweird.f32 %v131
    %vm149 = vweird.f32 %v142
    %vm150 = vmor %vm148, %vm149
    %v151 = vsel %vm150, %v142, %v147
    %v152 = vmul.f32 %v118, %v141
    %v153 = vmul.f32 %v119, %v151
    %v154 = vperm.slane %v22, 0
    %v155 = vmul.f32 %v152, %v154
    %v156 = vmul.f32 %v153, %v154
    %v157 = vperm.slane %v23, 0
    %v158 = vadd.f32 %v155, %v157
    %v159 = vadd.f32 %v156, %v157
    %v160 = vperm.slane %v24, 0
    %v162 = vsel %vm102, %v158, 0
    %v165 = vsel %vm102, %v159, 0
    %167 = vmatpush.msra.mxu0 0.0
    %168 = vmatpush.msra.mxu0 0.0
    %169 = vmatpush.msra.mxu0 0.0
    %170 = vmatpush.msra.mxu0 0.0
    %171 = vmatpush.msra.mxu0 0.0
    %172 = vmatpush.msra.mxu0 0.0
    %173 = vmatpush.msra.mxu0 0.0
    %174 = vmatpush.msra.mxu0 0.0
    %175 = vmatpush.msra.mxu0 0.0
    %176 = vmatpush.msra.mxu0 0.0
    %177 = vmatpush.msra.mxu0 0.0
    %178 = vmatpush.msra.mxu0 0.0
    %179 = vmatpush.msra.mxu0 %v36
    %180 = vmatpush.msra.mxu0 %v35
    %181 = vmatpush.msra.mxu0 %v34
    %182 = vmatpush.msra.mxu0 %v33
    %183 = vmatmul.f32.gmra.mxu0 %v162
    %v184 = vpop.f32.mrf.mxu0
    %v185 = vadd.f32 %v160, %v184
    %186 = vmatmul.f32.gmra.mxu0 %v165
    %v187 = vpop.f32.mrf.mxu0
    %v188 = vadd.f32 %v160, %v187
    %189 = vdwg.mxu0
    %v190 = vadd.f32 %v185, %v158
    %v191 = vadd.f32 %v188, %v159
    %v192 = vsel %vm102, %v190, 0.0
    %193 = vadd.xlane.f32.xlu0 %v192
    %v194 = vpop.xlane.xlu0 %193
    %v195 = vsel %vm102, %v191, 0.0
    %196 = vadd.xlane.f32.xlu0 %v195
    %v197 = vpop.xlane.xlu0 %196
    %v198 = vmul.f32 %v194, %v115
    %v199 = vmul.f32 %v197, %v115
    %v200 = vsub.f32 %v190, %v198
    %v201 = vsub.f32 %v191, %v199
    %v202 = vmul.f32 %v200, %v200
    %v203 = vmul.f32 %v201, %v201
    %v204 = vsel %vm102, %v202, 0.0
    %205 = vadd.xlane.f32.xlu0 %v204
    %v206 = vpop.xlane.xlu0 %205
    %v207 = vsel %vm102, %v203, 0.0
    %208 = vadd.xlane.f32.xlu0 %v207
    %v209 = vpop.xlane.xlu0 %208
    %v210 = vmul.f32 %v206, %v115
    %v211 = vmul.f32 %v209, %v115
    %v212 = vadd.f32 %v210, 0.1
    %v213 = vadd.f32 %v211, 0.1
    %v214 = vrsqrt.pop %v212
    %v215 = vmul.f32 %v214, %v212
    %v216 = vmul.f32 %v215, %v214
    %v217 = vmul.f32 0.5, %v216
    %v218 = vsub.f32 1.5, %v217
    %v219 = vmul.f32 %v214, %v218
    %vm220 = vweird.f32 %v212
    %vm221 = vweird.f32 %v214
    %vm222 = vmor %vm220, %vm221
    %v223 = vsel %vm222, %v214, %v219
    %v224 = vrsqrt.pop %v213
    %v225 = vmul.f32 %v224, %v213
    %v226 = vmul.f32 %v225, %v224
    %v227 = vmul.f32 0.5, %v226
    %v228 = vsub.f32 1.5, %v227
    %v229 = vmul.f32 %v224, %v228
    %vm230 = vweird.f32 %v213
    %vm231 = vweird.f32 %v224
    %vm232 = vmor %vm230, %vm231
    %v233 = vsel %vm232, %v224, %v229
    %v234 = vmul.f32 %v200, %v223
    %v235 = vmul.f32 %v201, %v233
    %v236 = vperm.slane %v25, 0
    %v237 = vmul.f32 %v234, %v236
    %v238 = vmul.f32 %v235, %v236
    %v239 = vperm.slane %v26, 0
    %v240 = vadd.f32 %v237, %v239
    %v241 = vadd.f32 %v238, %v239
    %v243 = vsel %vm43, %v39, 0
    %v246 = vsel %vm43, %v40, 0
    %248 = vmatpush.msra.mxu0 0.0
    %249 = vmatpush.msra.mxu0 0.0
    %250 = vmatpush.msra.mxu0 0.0
    %251 = vmatpush.msra.mxu0 0.0
    %252 = vmatpush.msra.mxu0 0.0
    %253 = vmatpush.msra.mxu0 0.0
    %254 = vmatpush.msra.mxu0 0.0
    %255 = vmatpush.msra.mxu0 0.0
    %256 = vmatpush.msra.mxu0 0.0
    %257 = vmatpush.msra.mxu0 0.0
    %258 = vmatpush.msra.mxu0 %v32
    %259 = vmatpush.msra.mxu0 %v31
    %260 = vmatpush.msra.mxu0 %v30
    %261 = vmatpush.msra.mxu0 %v29
    %262 = vmatpush.msra.mxu0 %v28
    %263 = vmatpush.msra.mxu0 %v27
    %264 = vmatmul.f32.gmra.mxu0 %v243
    %v265 = vpop.f32.mrf.mxu0
    %v266 = vadd.f32 %v72, %v265
    %267 = vmatmul.f32.gmra.mxu0 %v246
    %v268 = vpop.f32.mrf.mxu0
    %v269 = vadd.f32 %v72, %v268
    %270 = vdwg.mxu0
    %v271 = vsel %vm102, %v266, 0.0
    %272 = vadd.xlane.f32.xlu0 %v271
    %v273 = vpop.xlane.xlu0 %272
    %v274 = vsel %vm102, %v269, 0.0
    %275 = vadd.xlane.f32.xlu0 %v274
    %v276 = vpop.xlane.xlu0 %275
    %v277 = vmul.f32 %v273, %v115
    %v278 = vmul.f32 %v276, %v115
    %v279 = vsub.f32 %v266, %v277
    %v280 = vsub.f32 %v269, %v278
    %v281 = vmul.f32 %v279, %v279
    %v282 = vmul.f32 %v280, %v280
    %v283 = vsel %vm102, %v281, 0.0
    %284 = vadd.xlane.f32.xlu0 %v283
    %v285 = vpop.xlane.xlu0 %284
    %v286 = vsel %vm102, %v282, 0.0
    %287 = vadd.xlane.f32.xlu0 %v286
    %v288 = vpop.xlane.xlu0 %287
    %v289 = vmul.f32 %v285, %v115
    %v290 = vmul.f32 %v288, %v115
    %v291 = vadd.f32 %v289, 0.1
    %v292 = vadd.f32 %v290, 0.1
    %v293 = vrsqrt.pop %v291
    %v294 = vmul.f32 %v293, %v291
    %v295 = vmul.f32 %v294, %v293
    %v296 = vmul.f32 0.5, %v295
    %v297 = vsub.f32 1.5, %v296
    %v298 = vmul.f32 %v293, %v297
    %vm299 = vweird.f32 %v291
    %vm300 = vweird.f32 %v293
    %vm301 = vmor %vm299, %vm300
    %v302 = vsel %vm301, %v293, %v298
    %v303 = vrsqrt.pop %v292
    %v304 = vmul.f32 %v303, %v292
    %v305 = vmul.f32 %v304, %v303
    %v306 = vmul.f32 0.5, %v305
    %v307 = vsub.f32 1.5, %v306
    %v308 = vmul.f32 %v303, %v307
    %vm309 = vweird.f32 %v292
    %vm310 = vweird.f32 %v303
    %vm311 = vmor %vm309, %vm310
    %v312 = vsel %vm311, %v303, %v308
    %v313 = vmul.f32 %v279, %v302
    %v314 = vmul.f32 %v280, %v312
    %v315 = vmul.f32 %v313, %v154
    %v316 = vmul.f32 %v314, %v154
    %v317 = vadd.f32 %v315, %v157
    %v318 = vadd.f32 %v316, %v157
    %v320 = vsel %vm102, %v317, 0
    %v323 = vsel %vm102, %v318, 0
    %325 = vmatpush.msra.mxu0 0.0
    %326 = vmatpush.msra.mxu0 0.0
    %327 = vmatpush.msra.mxu0 0.0
    %328 = vmatpush.msra.mxu0 0.0
    %329 = vmatpush.msra.mxu0 0.0
    %330 = vmatpush.msra.mxu0 0.0
    %331 = vmatpush.msra.mxu0 0.0
    %332 = vmatpush.msra.mxu0 0.0
    %333 = vmatpush.msra.mxu0 0.0
    %334 = vmatpush.msra.mxu0 0.0
    %335 = vmatpush.msra.mxu0 0.0
    %336 = vmatpush.msra.mxu0 0.0
    %337 = vmatpush.msra.mxu0 %v36
    %338 = vmatpush.msra.mxu0 %v35
    %339 = vmatpush.msra.mxu0 %v34
    %340 = vmatpush.msra.mxu0 %v33
    %341 = vmatmul.f32.gmra.mxu0 %v320
    %v342 = vpop.f32.mrf.mxu0
    %v343 = vadd.f32 %v160, %v342
    %344 = vmatmul.f32.gmra.mxu0 %v323
    %v345 = vpop.f32.mrf.mxu0
    %v346 = vadd.f32 %v160, %v345
    %347 = vdwg.mxu0
    %v348 = vadd.f32 %v343, %v317
    %v349 = vadd.f32 %v346, %v318
    %v350 = vsel %vm102, %v348, 0.0
    %351 = vadd.xlane.f32.xlu0 %v350
    %v352 = vpop.xlane.xlu0 %351
    %v353 = vsel %vm102, %v349, 0.0
    %354 = vadd.xlane.f32.xlu0 %v353
    %v355 = vpop.xlane.xlu0 %354
    %v356 = vmul.f32 %v352, %v115
    %v357 = vmul.f32 %v355, %v115
    %v358 = vsub.f32 %v348, %v356
    %v359 = vsub.f32 %v349, %v357
    %v360 = vmul.f32 %v358, %v358
    %v361 = vmul.f32 %v359, %v359
    %v362 = vsel %vm102, %v360, 0.0
    %363 = vadd.xlane.f32.xlu0 %v362
    %v364 = vpop.xlane.xlu0 %363
    %v365 = vsel %vm102, %v361, 0.0
    %366 = vadd.xlane.f32.xlu0 %v365
    %v367 = vpop.xlane.xlu0 %366
    %v368 = vmul.f32 %v364, %v115
    %v369 = vmul.f32 %v367, %v115
    %v370 = vadd.f32 %v368, 0.1
    %v371 = vadd.f32 %v369, 0.1
    %v372 = vrsqrt.pop %v370
    %v373 = vmul.f32 %v372, %v370
    %v374 = vmul.f32 %v373, %v372
    %v375 = vmul.f32 0.5, %v374
    %v376 = vsub.f32 1.5, %v375
    %v377 = vmul.f32 %v372, %v376
    %vm378 = vweird.f32 %v370
    %vm379 = vweird.f32 %v372
    %vm380 = vmor %vm378, %vm379
    %v381 = vsel %vm380, %v372, %v377
    %v382 = vrsqrt.pop %v371
    %v383 = vmul.f32 %v382, %v371
    %v384 = vmul.f32 %v383, %v382
    %v385 = vmul.f32 0.5, %v384
    %v386 = vsub.f32 1.5, %v385
    %v387 = vmul.f32 %v382, %v386
    %vm388 = vweird.f32 %v371
    %vm389 = vweird.f32 %v382
    %vm390 = vmor %vm388, %vm389
    %v391 = vsel %vm390, %v382, %v387
    %v392 = vmul.f32 %v358, %v381
    %v393 = vmul.f32 %v359, %v391
    %v394 = vmul.f32 %v392, %v236
    %v395 = vmul.f32 %v393, %v236
    %v396 = vadd.f32 %v394, %v239
    %v397 = vadd.f32 %v395, %v239
    %398 = vst.msk [vmem:[#allocation2] sm:$0xff] %vm102, %v240
    %399 = vst.msk [vmem:[#allocation2 + $0x8] sm:$0xff] %vm102, %v241
    %402 = vrot.lane.b32.xlu0 %v396, 32
    %v403 = vpop.permute.xlu0 %402
    %404 = vrot.lane.b32.xlu0 %v397, 32
    %v405 = vpop.permute.xlu0 %404
    %vm408 = vcmask 523520
    %409 = vst.msk [vmem:[#allocation2] sm:$0xff] %vm408, %v403
    %410 = vst.msk [vmem:[#allocation2 + $0x8] sm:$0xff] %vm408, %v405
    %411 = vrot.lane.b32.xlu0 %v70, 64
    %v412 = vpop.permute.xlu0 %411
    %413 = vrot.lane.b32.xlu0 %v71, 64
    %v414 = vpop.permute.xlu0 %413
    %vm417 = vcmask 916992
    %418 = vst.msk [vmem:[#allocation2] sm:$0xff] %vm417, %v412
    %419 = vst.msk [vmem:[#allocation2 + $0x8] sm:$0xff] %vm417, %v414
    %vm420 = vcmask 1048448
    %421 = vst.msk [vmem:[#allocation2] sm:$0xff] %vm420, 0.0
    %422 = vst.msk [vmem:[#allocation2 + $0x8] sm:$0xff] %vm420, 0.0
    // Predicated region
    $region22: #{tpu_custom_call.1} parent=1 // pred_check
      _
    $region23: #{tpu_custom_call.1} parent=1 // pred_check_branch
      %424 = sbr.rel (0) target = $region25
    $region24: #{tpu_custom_call.1} parent=1 // pred_region
      %426 = vsyncadd [#allocation3], 0
      %s427 = sshll.u32 [#allocation2], 4
      %s428 = int_to_ptr.vmem [resolvable:$true] %s427
      %s429 = sshll.u32 %s5, 4
      %s430 = int_to_ptr.hbm [resolvable:$true] %s429
      %435 = dma.vmem_to_hbm [thread:$0]  %s428, 256, %s430, [#allocation3], 128, 128, 8
    $region25: #{tpu_custom_call.1} parent=1 // pred_fallthru
      _
    // Predicated region
    $region26: #{tpu_custom_call.1} parent=1 // pred_check
      _
    $region27: #{tpu_custom_call.1} parent=1 // pred_check_branch
      %437 = sbr.rel (0) target = $region29
    $region28: #{tpu_custom_call.1} parent=1 // pred_region
      %439 = dma.done [#allocation3], 256
    $region29: #{tpu_custom_call.1} parent=1 // pred_fallthru
      _
    %440 = vsyncpa [#allocation3], 1

</llo_original>
